<compile_context>
chip_gen: v5e
topology: v5e:2x2
jax: 0.10.0
libtpu: 0.0.40
codegen_flags: <defaults>
</compile_context>

<pallas_src>
import functools

import jax
import jax.numpy as jnp
from jax.experimental import pallas as pl
from jax.experimental.pallas import tpu as pltpu

_LANE = 128
_SUBLANE = 8


def _round_up(n, m):
    return ((n + m - 1) // m) * m


def _net_kernel(h_pad, c_pad,
                x_ref, w1_ref, b1_ref, wh0_ref, bh0_ref, wf_ref, bf_ref,
                hp_ref, p_ref, z_ref):
    """Grid axis 0 iterates over hidden layers; z_ref carries hidden_outs[i]."""
    i = pl.program_id(0)
    num_layers = pl.num_programs(0)

    # Step 0: seed the carried activation  z = hidden_outs[0]
    #         (fc1 + ReLU, then hidden layer 0 + ReLU).
    @pl.when(i == 0)
    def _():
        a = jnp.dot(x_ref[...], w1_ref[...], preferred_element_type=jnp.float32)
        a = jnp.maximum(a + b1_ref[...], 0.0)
        z = jnp.dot(a, wh0_ref[...], preferred_element_type=jnp.float32)
        z_ref[...] = jnp.maximum(z + bh0_ref[...], 0.0)

    # Fused matmul on the shared activation z = hidden_outs[i]:
    #   cols [:h_pad]  -> next hidden layer (or fc_last on the final step)
    #   cols [h_pad:]  -> this layer's output head
    y = jnp.dot(z_ref[...], wf_ref[0], preferred_element_type=jnp.float32)
    y = y + bf_ref[0]

    # Lane-dense [B_pad, 128] store of this layer's head probabilities.
    hp_ref[0] = jax.nn.sigmoid(y[:, h_pad:])

    @pl.when(i < num_layers - 1)
    def _():
        z_ref[...] = jnp.maximum(y[:, :h_pad], 0.0)

    @pl.when(i == num_layers - 1)
    def _():
        p_ref[...] = jax.nn.sigmoid(y[:, :c_pad])


def net_forward_pallas(x, params, num_hidden_layers):
    """x: [B, input_size] f32.  params: dict of stacked weights (see make_params)."""
    B, I = x.shape
    H = params["w1"].shape[1]
    C = params["w_last"].shape[1]
    L = num_hidden_layers

    B_pad = _round_up(B, _SUBLANE)
    I_pad = _round_up(I, _SUBLANE)
    H_pad = _round_up(H, _LANE)
    C_pad = _round_up(C, _LANE)
    assert C_pad <= H_pad, "fused-head layout assumes C_pad <= H_pad"

    f32 = jnp.float32
    # Zero-pad once in the wrapper so every kernel operand is tile-aligned.
    x_p = jnp.zeros((B_pad, I_pad), f32).at[:B, :I].set(x)
    w1_p = jnp.zeros((I_pad, H_pad), f32).at[:I, :H].set(params["w1"])
    b1_p = jnp.zeros((1, H_pad), f32).at[:, :H].set(params["b1"])
    wh0_p = jnp.zeros((H_pad, H_pad), f32).at[:H, :H].set(params["w_hidden"][0])
    bh0_p = jnp.zeros((1, H_pad), f32).at[:, :H].set(params["b_hidden"][0])

    # Fused per-layer weights: [L, H_pad, H_pad + C_pad]
    #   slot 0 (cols :H_pad)  = w_hidden[i+1]  (or w_last on the last layer)
    #   slot 1 (cols H_pad:)  = w_out[i]
    wf = jnp.zeros((L, H_pad, H_pad + C_pad), f32)
    bf = jnp.zeros((L, 1, H_pad + C_pad), f32)
    if L > 1:
        wf = wf.at[:L - 1, :H, :H].set(params["w_hidden"][1:])
        bf = bf.at[:L - 1, :, :H].set(params["b_hidden"][1:])
    wf = wf.at[L - 1, :H, :C].set(params["w_last"])
    bf = bf.at[L - 1, :, :C].set(params["b_last"])
    wf = wf.at[:, :H, H_pad:H_pad + C].set(params["w_out"])
    bf = bf.at[:, :, H_pad:H_pad + C].set(params["b_out"])

    kernel = functools.partial(_net_kernel, H_pad, C_pad)

    grid_spec = pltpu.PrefetchScalarGridSpec(
        num_scalar_prefetch=0,
        grid=(L,),
        in_specs=[
            pl.BlockSpec((B_pad, I_pad), lambda i: (0, 0)),            # x
            pl.BlockSpec((I_pad, H_pad), lambda i: (0, 0)),            # w1
            pl.BlockSpec((1, H_pad), lambda i: (0, 0)),                # b1
            pl.BlockSpec((H_pad, H_pad), lambda i: (0, 0)),            # w_hidden[0]
            pl.BlockSpec((1, H_pad), lambda i: (0, 0)),                # b_hidden[0]
            pl.BlockSpec((1, H_pad, H_pad + C_pad), lambda i: (i, 0, 0)),  # fused W
            pl.BlockSpec((1, 1, H_pad + C_pad), lambda i: (i, 0, 0)),      # fused b
        ],
        out_specs=(
            pl.BlockSpec((1, B_pad, C_pad), lambda i: (i, 0, 0)),      # hp (per layer)
            pl.BlockSpec((B_pad, C_pad), lambda i: (0, 0)),            # p (final step)
        ),
        scratch_shapes=[pltpu.VMEM((B_pad, H_pad), jnp.float32)],      # carried h
    )

    hp_pad, p_pad = pl.pallas_call(
        kernel,
        out_shape=(
            jax.ShapeDtypeStruct((L, B_pad, C_pad), jnp.float32),
            jax.ShapeDtypeStruct((B_pad, C_pad), jnp.float32),
        ),
        grid_spec=grid_spec,
        compiler_params=pltpu.CompilerParams(
            dimension_semantics=("arbitrary",),       # layer steps are sequential
            vmem_limit_bytes=32 * 1024 * 1024,
        ),
    )(x_p, w1_p, b1_p, wh0_p, bh0_p, wf, bf)

    return hp_pad[:, :B, :C], p_pad[:B, :C]


def make_params(key, input_size, hidden_size, num_hidden_layers, num_classes):
    """Deterministic synthetic parameters.

    Weights are stored [in_features, out_features] (transpose of
    nn.Linear.weight); biases [1, out] / [L, 1, out].
    """
    ks = jax.random.split(key, 8)

    def u(k, shape, fan_in):
        bound = 1.0 / jnp.sqrt(fan_in)
        return jax.random.uniform(k, shape, jnp.float32, -bound, bound)

    H, I, C, L = hidden_size, input_size, num_classes, num_hidden_layers
    return {
        "w1":       u(ks[0], (I, H), I),
        "b1":       u(ks[1], (1, H), I),
        "w_hidden": u(ks[2], (L, H, H), H),
        "b_hidden": u(ks[3], (L, 1, H), H),
        "w_out":    u(ks[4], (L, H, C), H),
        "b_out":    u(ks[5], (L, 1, C), H),
        "w_last":   u(ks[6], (H, C), H),
        "b_last":   u(ks[7], (1, C), H),
    }


def net_forward_ref(x, params, num_hidden_layers):
    """Pure-JAX reference mirroring the PyTorch forward."""
    h = jnp.maximum(x @ params["w1"] + params["b1"], 0.0)
    hp = []
    for i in range(num_hidden_layers):
        h = jnp.maximum(h @ params["w_hidden"][i] + params["b_hidden"][i], 0.0)
        hp.append(jax.nn.sigmoid(h @ params["w_out"][i] + params["b_out"][i]))
    p = jax.nn.sigmoid(h @ params["w_last"] + params["b_last"])
    return jnp.stack(hp, axis=0), p


if __name__ == "__main__":
    # Small shapes consistent with the module's forward.
    B, INPUT, HIDDEN, L, C = 8, 16, 32, 2, 1

    key = jax.random.PRNGKey(0)
    kx, kp = jax.random.split(key)
    x = jax.random.normal(kx, (B, INPUT), jnp.float32)
    params = make_params(kp, INPUT, HIDDEN, L, C)

    hp, p = net_forward_pallas(x, params, L)
    hp = jax.block_until_ready(hp)
    p = jax.block_until_ready(p)

    hp_ref, p_ref = net_forward_ref(x, params, L)
    assert hp.shape == (L, B, C) and p.shape == (B, C)
    assert jnp.allclose(hp, hp_ref, atol=1e-5, rtol=1e-5)
    assert jnp.allclose(p, p_ref, atol=1e-5, rtol=1e-5)

    # TODO(synk): the PyTorch NaN/Inf "print" diagnostics are host-side side
    # effects with no Pallas equivalent; omitted (no numeric effect).
    print("KERNEL_OK")
</pallas_src>

<mosaic_0001>
module attributes {stable_mosaic.version = 11 : i64} {
  func.func @_net_kernel(%arg0: i32, %arg1: memref<8x16xf32, #tpu.memory_space<vmem>>, %arg2: memref<16x128xf32, #tpu.memory_space<vmem>>, %arg3: memref<1x128xf32, #tpu.memory_space<vmem>>, %arg4: memref<128x128xf32, #tpu.memory_space<vmem>>, %arg5: memref<1x128xf32, #tpu.memory_space<vmem>>, %arg6: memref<1x128x256xf32, #tpu.memory_space<vmem>>, %arg7: memref<1x1x256xf32, #tpu.memory_space<vmem>>, %arg8: memref<1x8x128xf32, #tpu.memory_space<vmem>>, %arg9: memref<8x128xf32, #tpu.memory_space<vmem>>, %arg10: memref<8x128xf32, #tpu.memory_space<vmem>>) attributes {dimension_semantics = [#tpu.dimension_semantics<arbitrary>], iteration_bounds = array<i64: 2>, scalar_prefetch = 0 : i64, scratch_operands = 1 : i64, tpu.core_type = #tpu.core_type<tc>, window_params = [{pipeline_mode = #tpu.pipeline_mode<synchronous>, transform_indices = @transform_0, window_bounds = array<i64: 8, 16>}, {pipeline_mode = #tpu.pipeline_mode<synchronous>, transform_indices = @transform_1, window_bounds = array<i64: 16, 128>}, {pipeline_mode = #tpu.pipeline_mode<synchronous>, transform_indices = @transform_2, window_bounds = array<i64: 1, 128>}, {pipeline_mode = #tpu.pipeline_mode<synchronous>, transform_indices = @transform_3, window_bounds = array<i64: 128, 128>}, {pipeline_mode = #tpu.pipeline_mode<synchronous>, transform_indices = @transform_4, window_bounds = array<i64: 1, 128>}, {transform_indices = @transform_5, window_bounds = array<i64: 1, 128, 256>}, {transform_indices = @transform_6, window_bounds = array<i64: 1, 1, 256>}, {transform_indices = @transform_7, window_bounds = array<i64: 1, 8, 128>}, {pipeline_mode = #tpu.pipeline_mode<synchronous>, transform_indices = @transform_8, window_bounds = array<i64: 8, 128>}]} {
    %c0_i32 = arith.constant 0 : i32
    %0 = arith.cmpi eq, %arg0, %c0_i32 : i32
    %1 = arith.extui %0 : i1 to i32
    %c0_i32_0 = arith.constant 0 : i32
    %2 = arith.cmpi ne, %1, %c0_i32_0 : i32
    scf.if %2 {
      %c0_15 = arith.constant 0 : index
      %c0_16 = arith.constant 0 : index
      %26 = vector.load %arg1[%c0_15, %c0_16] : memref<8x16xf32, #tpu.memory_space<vmem>>, vector<8x16xf32>
      %c0_17 = arith.constant 0 : index
      %c0_18 = arith.constant 0 : index
      %27 = vector.load %arg2[%c0_17, %c0_18] : memref<16x128xf32, #tpu.memory_space<vmem>>, vector<16x128xf32>
      %cst_19 = arith.constant dense<0.000000e+00> : vector<8x128xf32>
      %28 = tpu.matmul %26, %27, %cst_19 {dimension_numbers = #tpu.dot_dimension_numbers<[1], [0], [0], [1], [0, 0, 1, 1], [], []>} : vector<8x16xf32>, vector<16x128xf32>, vector<8x128xf32> -> vector<8x128xf32>
      %c0_20 = arith.constant 0 : index
      %c0_21 = arith.constant 0 : index
      %29 = vector.load %arg3[%c0_20, %c0_21] : memref<1x128xf32, #tpu.memory_space<vmem>>, vector<1x128xf32>
      %30 = vector.broadcast %29 : vector<1x128xf32> to vector<8x128xf32>
      %31 = arith.addf %28, %30 : vector<8x128xf32>
      %cst_22 = arith.constant 0.000000e+00 : f32
      %32 = vector.broadcast %cst_22 : f32 to vector<8x128xf32>
      %33 = arith.maximumf %31, %32 : vector<8x128xf32>
      %c0_23 = arith.constant 0 : index
      %c0_24 = arith.constant 0 : index
      %34 = vector.load %arg4[%c0_23, %c0_24] : memref<128x128xf32, #tpu.memory_space<vmem>>, vector<128x128xf32>
      %cst_25 = arith.constant dense<0.000000e+00> : vector<8x128xf32>
      %35 = tpu.matmul %33, %34, %cst_25 {dimension_numbers = #tpu.dot_dimension_numbers<[1], [0], [0], [1], [0, 0, 1, 1], [], []>} : vector<8x128xf32>, vector<128x128xf32>, vector<8x128xf32> -> vector<8x128xf32>
      %c0_26 = arith.constant 0 : index
      %c0_27 = arith.constant 0 : index
      %36 = vector.load %arg5[%c0_26, %c0_27] : memref<1x128xf32, #tpu.memory_space<vmem>>, vector<1x128xf32>
      %37 = vector.broadcast %36 : vector<1x128xf32> to vector<8x128xf32>
      %38 = arith.addf %35, %37 : vector<8x128xf32>
      %cst_28 = arith.constant 0.000000e+00 : f32
      %39 = vector.broadcast %cst_28 : f32 to vector<8x128xf32>
      %40 = arith.maximumf %38, %39 : vector<8x128xf32>
      %c0_29 = arith.constant 0 : index
      %c0_30 = arith.constant 0 : index
      %41 = vector.load %arg10[%c0_29, %c0_30] : memref<8x128xf32, #tpu.memory_space<vmem>>, vector<8x128xf32>
      tpu.vector_store %arg10[%c0_29, %c0_30], %40 {strides = array<i32>} : memref<8x128xf32, #tpu.memory_space<vmem>>, vector<8x128xf32>,
    } else {
    }
    %c0 = arith.constant 0 : index
    %c0_1 = arith.constant 0 : index
    %3 = vector.load %arg10[%c0, %c0_1] : memref<8x128xf32, #tpu.memory_space<vmem>>, vector<8x128xf32>
    %c0_2 = arith.constant 0 : index
    %c0_3 = arith.constant 0 : index
    %c0_4 = arith.constant 0 : index
    %4 = vector.load %arg6[%c0_2, %c0_3, %c0_4] : memref<1x128x256xf32, #tpu.memory_space<vmem>>, vector<1x128x256xf32>
    %5 = vector.shape_cast %4 : vector<1x128x256xf32> to vector<128x256xf32>
    %cst = arith.constant dense<0.000000e+00> : vector<8x256xf32>
    %6 = tpu.matmul %3, %5, %cst {dimension_numbers = #tpu.dot_dimension_numbers<[1], [0], [0], [1], [0, 0, 1, 1], [], []>} : vector<8x128xf32>, vector<128x256xf32>, vector<8x256xf32> -> vector<8x256xf32>
    %c0_5 = arith.constant 0 : index
    %c0_6 = arith.constant 0 : index
    %c0_7 = arith.constant 0 : index
    %7 = vector.load %arg7[%c0_5, %c0_6, %c0_7] : memref<1x1x256xf32, #tpu.memory_space<vmem>>, vector<1x1x256xf32>
    %8 = vector.shape_cast %7 : vector<1x1x256xf32> to vector<1x256xf32>
    %9 = vector.broadcast %8 : vector<1x256xf32> to vector<8x256xf32>
    %10 = arith.addf %6, %9 : vector<8x256xf32>
    %11 = vector.extract_strided_slice %10 {offsets = [0, 128], sizes = [8, 128], strides = [1, 1]} : vector<8x256xf32> to vector<8x128xf32>
    %12 = arith.negf %11 : vector<8x128xf32>
    %13 = math.exp %12 : vector<8x128xf32>
    %cst_8 = arith.constant 1.000000e+00 : f32
    %14 = vector.broadcast %cst_8 : f32 to vector<8x128xf32>
    %15 = arith.addf %14, %13 : vector<8x128xf32>
    %16 = arith.divf %14, %15 : vector<8x128xf32>
    %c0_9 = arith.constant 0 : index
    %c0_10 = arith.constant 0 : index
    %c0_11 = arith.constant 0 : index
    %17 = vector.load %arg8[%c0_9, %c0_10, %c0_11] : memref<1x8x128xf32, #tpu.memory_space<vmem>>, vector<1x8x128xf32>
    %18 = vector.shape_cast %17 : vector<1x8x128xf32> to vector<8x128xf32>
    %19 = vector.shape_cast %16 : vector<8x128xf32> to vector<1x8x128xf32>
    tpu.vector_store %arg8[%c0_9, %c0_10, %c0_11], %19 {strides = array<i32>} : memref<1x8x128xf32, #tpu.memory_space<vmem>>, vector<1x8x128xf32>,
    %c1_i32 = arith.constant 1 : i32
    %20 = arith.cmpi slt, %arg0, %c1_i32 : i32
    %21 = arith.extui %20 : i1 to i32
    %c0_i32_12 = arith.constant 0 : i32
    %22 = arith.cmpi ne, %21, %c0_i32_12 : i32
    scf.if %22 {
      %26 = vector.extract_strided_slice %10 {offsets = [0, 0], sizes = [8, 128], strides = [1, 1]} : vector<8x256xf32> to vector<8x128xf32>
      %cst_15 = arith.constant 0.000000e+00 : f32
      %27 = vector.broadcast %cst_15 : f32 to vector<8x128xf32>
      %28 = arith.maximumf %26, %27 : vector<8x128xf32>
      %c0_16 = arith.constant 0 : index
      %c0_17 = arith.constant 0 : index
      %29 = vector.load %arg10[%c0_16, %c0_17] : memref<8x128xf32, #tpu.memory_space<vmem>>, vector<8x128xf32>
      tpu.vector_store %arg10[%c0_16, %c0_17], %28 {strides = array<i32>} : memref<8x128xf32, #tpu.memory_space<vmem>>, vector<8x128xf32>,
    } else {
    }
    %c1_i32_13 = arith.constant 1 : i32
    %23 = arith.cmpi eq, %arg0, %c1_i32_13 : i32
    %24 = arith.extui %23 : i1 to i32
    %c0_i32_14 = arith.constant 0 : i32
    %25 = arith.cmpi ne, %24, %c0_i32_14 : i32
    scf.if %25 {
      %26 = vector.extract_strided_slice %10 {offsets = [0, 0], sizes = [8, 128], strides = [1, 1]} : vector<8x256xf32> to vector<8x128xf32>
      %27 = arith.negf %26 : vector<8x128xf32>
      %28 = math.exp %27 : vector<8x128xf32>
      %cst_15 = arith.constant 1.000000e+00 : f32
      %29 = vector.broadcast %cst_15 : f32 to vector<8x128xf32>
      %30 = arith.addf %29, %28 : vector<8x128xf32>
      %31 = arith.divf %29, %30 : vector<8x128xf32>
      %c0_16 = arith.constant 0 : index
      %c0_17 = arith.constant 0 : index
      %32 = vector.load %arg9[%c0_16, %c0_17] : memref<8x128xf32, #tpu.memory_space<vmem>>, vector<8x128xf32>
      tpu.vector_store %arg9[%c0_16, %c0_17], %31 {strides = array<i32>} : memref<8x128xf32, #tpu.memory_space<vmem>>, vector<8x128xf32>,
    } else {
    }
    return
  }
  func.func @transform_0(%arg0: i32) -> (i32, i32) {
    %c0_i32 = arith.constant 0 : i32
    %c0_i32_0 = arith.constant 0 : i32
    %c0_i32_1 = arith.constant 0 : i32
    return %c0_i32, %c0_i32_0 : i32, i32
  }
  func.func @transform_1(%arg0: i32) -> (i32, i32) {
    %c0_i32 = arith.constant 0 : i32
    %c0_i32_0 = arith.constant 0 : i32
    %c0_i32_1 = arith.constant 0 : i32
    return %c0_i32, %c0_i32_0 : i32, i32
  }
  func.func @transform_2(%arg0: i32) -> (i32, i32) {
    %c0_i32 = arith.constant 0 : i32
    %c0_i32_0 = arith.constant 0 : i32
    %c0_i32_1 = arith.constant 0 : i32
    return %c0_i32, %c0_i32_0 : i32, i32
  }
  func.func @transform_3(%arg0: i32) -> (i32, i32) {
    %c0_i32 = arith.constant 0 : i32
    %c0_i32_0 = arith.constant 0 : i32
    %c0_i32_1 = arith.constant 0 : i32
    return %c0_i32, %c0_i32_0 : i32, i32
  }
  func.func @transform_4(%arg0: i32) -> (i32, i32) {
    %c0_i32 = arith.constant 0 : i32
    %c0_i32_0 = arith.constant 0 : i32
    %c0_i32_1 = arith.constant 0 : i32
    return %c0_i32, %c0_i32_0 : i32, i32
  }
  func.func @transform_5(%arg0: i32) -> (i32, i32, i32) {
    %c0_i32 = arith.constant 0 : i32
    %c0_i32_0 = arith.constant 0 : i32
    %c0_i32_1 = arith.constant 0 : i32
    return %arg0, %c0_i32, %c0_i32_0 : i32, i32, i32
  }
  func.func @transform_6(%arg0: i32) -> (i32, i32, i32) {
    %c0_i32 = arith.constant 0 : i32
    %c0_i32_0 = arith.constant 0 : i32
    %c0_i32_1 = arith.constant 0 : i32
    return %arg0, %c0_i32, %c0_i32_0 : i32, i32, i32
  }
  func.func @transform_7(%arg0: i32) -> (i32, i32, i32) {
    %c0_i32 = arith.constant 0 : i32
    %c0_i32_0 = arith.constant 0 : i32
    %c0_i32_1 = arith.constant 0 : i32
    return %arg0, %c0_i32, %c0_i32_0 : i32, i32, i32
  }
  func.func @transform_8(%arg0: i32) -> (i32, i32) {
    %c0_i32 = arith.constant 0 : i32
    %c0_i32_0 = arith.constant 0 : i32
    %c0_i32_1 = arith.constant 0 : i32
    return %c0_i32, %c0_i32_0 : i32, i32
  }
}

</mosaic_0001>

<llo_original>
// kernel: tpu_custom_call.1
$region0: #{tpu_custom_call.1}
  #allocation0 [shape = 'u32[]', space=smem, size = 0x4, offset = 0x4, fixed_abs, tag = 'smem constant byte address 0x4 - core index']
  #allocation1 [shape = 'u32[72,128]{1,0:T(1,128)}', space=vmem, size = 0x9000, scoped, tag = 'internal scratch']
  #allocation2 [shape = 'f32[8,128]{1,0:T(8,128)}', space=vmem, size = 0x1000, scoped, tag = 'scratch operand']
  %s0 = inlined_call_operand.hbm [shape: f32[8,16], index: 0, kind: input, shape index: {}]
  %s1 = inlined_call_operand.hbm [shape: f32[16,128], index: 1, kind: input, shape index: {}]
  %s2 = inlined_call_operand.vmem [shape: f32[1,128], index: 2, kind: input, shape index: {}]
  %s3 = inlined_call_operand.hbm [shape: f32[128,128], index: 3, kind: input, shape index: {}]
  %s4 = inlined_call_operand.hbm [shape: f32[1,128], index: 4, kind: input, shape index: {}]
  %s5 = inlined_call_operand.hbm [shape: f32[2,128,256], index: 5, kind: input, shape index: {}]
  %s6 = inlined_call_operand.vmem [shape: f32[2,1,256], index: 6, kind: input, shape index: {}]
  %s7 = inlined_call_operand.hbm [shape: f32[2,8,128], index: 7, kind: output, shape index: {0}]
  %s8 = inlined_call_operand.hbm [shape: f32[8,128], index: 8, kind: output, shape index: {1}]
  %9 = xla_tuple %s7, %s8
  %s10 = sld [smem:[#allocation0]]
  $region101: #{tpu_custom_call.1} parent=0
    _
  %s12 = ssub.s32 1, %s10
  %s13 = scalar_select 0, %s12, %s10
  $region1: #{tpu_custom_call.1} parent=0
    #allocation3 [shape = 'u8[4096]{0}', space=vmem, size = 0x1000, scoped, tag = 'input window, operand 0, single buffered']
    #allocation4 [shape = 's32[2]{0}', space=sflag, size = 0x8, scoped, tag = 'scoped memory for tpu_custom_call.1']
    #allocation5 [shape = 's32[2]{0}', space=sflag, size = 0x8, scoped, tag = 'scoped memory for tpu_custom_call.1']
    #allocation6 [shape = 'u8[8192]{0}', space=vmem, size = 0x2000, scoped, tag = 'input window, operand 1, single buffered']
    #allocation7 [shape = 's32[1]{0}', space=sflag, size = 0x4, scoped, tag = 'scoped memory for tpu_custom_call.1']
    #allocation8 [shape = 'u8[65536]{0}', space=vmem, size = 0x10000, scoped, tag = 'input window, operand 3, single buffered']
    #allocation9 [shape = 'u8[512]{0}', space=vmem, size = 0x400, scoped, tag = 'input window, operand 4, single buffered']
    #allocation10 [shape = 's32[1]{0}', space=sflag, size = 0x4, scoped, tag = 'scoped memory for tpu_custom_call.1']
    #allocation11 [shape = 'u8[262144]{0}', space=vmem, size = 0x40000, scoped, tag = 'input window, operand 5']
    #allocation12 [shape = 'u8[8192]{0}', space=vmem, size = 0x2000, scoped, tag = 'output window, operand 0']
    #allocation13 [shape = 'u8[4096]{0}', space=vmem, size = 0x1000, scoped, tag = 'output window, operand 1, single buffered']
    #allocation14 [shape = 's32[1]{0}', space=sflag, size = 0x4, scoped, tag = 'scoped memory for tpu_custom_call.1']
    %14 = vsyncpa [#allocation4], 0
    %15 = vsyncpa [#allocation7], 0
    %16 = vsyncpa [#allocation10], 0
    %17 = vsyncpa [#allocation5], 0
    %s18 = scalar_lea.sflag [#allocation5], 1
    %19 = vsyncpa %s18, 0
    %20 = vsyncpa [#allocation14], 0
    loop: start=0, step=1, limit=4
    $region2: #{tpu_custom_call.1} parent=1 // loop_pre_header
      _
    $region3: #{tpu_custom_call.1} parent=1 // loop_header
      %s22 = sphi 0, %s26
      %p23 = scmp.ge.s32.totalorder %s22, 4
      %s30 = sphi 0, %s30
      %s32 = sphi 0, %s30
      %s33 = sphi 0, %s32
      %s47 = sphi 0, %s33
      %s51 = sphi 0, %s51
      %s53 = sphi 0, %s51
      %s54 = sphi 0, %s53
      %s68 = sphi 0, %s54
      %s72 = sphi 0, %s72
      %s74 = sphi 0, %s72
      %s75 = sphi 0, %s74
      %s89 = sphi 0, %s75
      %s93 = sphi 0, %s93
      %s95 = sphi 0, %s93
      %s96 = sphi 0, %s95
      %s110 = sphi 0, %s96
      %s114 = sphi 0, %s114
      %s116 = sphi 0, %s114
      %s117 = sphi 0, %s116
      %s131 = sphi 0, %s117
      %s137 = sphi 0, %s139
      %s140 = sphi 0, %s137
      %s141 = sphi 0, %s140
      %s157 = sphi 0, %s141
      %s163 = sphi 0, %s165
      %s166 = sphi 0, %s163
      %s167 = sphi 0, %s166
      %s183 = sphi 0, %s167
      %s189 = sphi 0, %s191
      %s192 = sphi 0, %s189
      %s193 = sphi 0, %s192
      %s209 = sphi 0, %s193
      %s213 = sphi 0, %s213
      %s215 = sphi 0, %s213
      %s216 = sphi 0, %s215
      %s230 = sphi 0, %s216
    $region4: #{tpu_custom_call.1} parent=1 // loop_header_branch
      %25 = sbr.rel (%p23) target = $region8
    $region5: #{tpu_custom_call.1} parent=1 // loop_body
      %s27 = ssub.s32 %s22, 1
      %s28 = ssub.s32 %s22, 2
      %s29 = sadd.s32 %s22, 1
      %s31 = sadd.s32 %s30, 1
      %p34 = scmp.eq.s32.totalorder %s22, 1
      %p35 = scmp.ne.s32.totalorder %s30, %s32
      %p36 = scmp.eq.s32.totalorder %s22, 0
      %p37 = por %p35, %p36
      %p38 = scmp.ne.s32.totalorder %s30, %s32
      %p39 = scmp.eq.s32.totalorder %s27, 1
      %p40 = por %p38, %p39
      %p41 = scmp.ne.s32.totalorder %s32, %s33
      %p42 = scmp.eq.s32.totalorder %s27, 0
      %p43 = por %p41, %p42
      %p44 = scmp.ne.s32.totalorder %s32, %s33
      %p45 = scmp.eq.s32.totalorder %s28, 1
      %p46 = por %p44, %p45
      %p48 = scmp.ne.s32.totalorder %s33, %s47
      %p49 = scmp.eq.s32.totalorder %s28, 0
      %p50 = por %p48, %p49
      %s52 = sadd.s32 %s51, 1
      %p55 = scmp.eq.s32.totalorder %s22, 1
      %p56 = scmp.ne.s32.totalorder %s51, %s53
      %p57 = scmp.eq.s32.totalorder %s22, 0
      %p58 = por %p56, %p57
      %p59 = scmp.ne.s32.totalorder %s51, %s53
      %p60 = scmp.eq.s32.totalorder %s27, 1
      %p61 = por %p59, %p60
      %p62 = scmp.ne.s32.totalorder %s53, %s54
      %p63 = scmp.eq.s32.totalorder %s27, 0
      %p64 = por %p62, %p63
      %p65 = scmp.ne.s32.totalorder %s53, %s54
      %p66 = scmp.eq.s32.totalorder %s28, 1
      %p67 = por %p65, %p66
      %p69 = scmp.ne.s32.totalorder %s54, %s68
      %p70 = scmp.eq.s32.totalorder %s28, 0
      %p71 = por %p69, %p70
      %s73 = sadd.s32 %s72, 1
      %p76 = scmp.eq.s32.totalorder %s22, 1
      %p77 = scmp.ne.s32.totalorder %s72, %s74
      %p78 = scmp.eq.s32.totalorder %s22, 0
      %p79 = por %p77, %p78
      %p80 = scmp.ne.s32.totalorder %s72, %s74
      %p81 = scmp.eq.s32.totalorder %s27, 1
      %p82 = por %p80, %p81
      %p83 = scmp.ne.s32.totalorder %s74, %s75
      %p84 = scmp.eq.s32.totalorder %s27, 0
      %p85 = por %p83, %p84
      %p86 = scmp.ne.s32.totalorder %s74, %s75
      %p87 = scmp.eq.s32.totalorder %s28, 1
      %p88 = por %p86, %p87
      %p90 = scmp.ne.s32.totalorder %s75, %s89
      %p91 = scmp.eq.s32.totalorder %s28, 0
      %p92 = por %p90, %p91
      %s94 = sadd.s32 %s93, 1
      %p97 = scmp.eq.s32.totalorder %s22, 1
      %p98 = scmp.ne.s32.totalorder %s93, %s95
      %p99 = scmp.eq.s32.totalorder %s22, 0
      %p100 = por %p98, %p99
      %p101 = scmp.ne.s32.totalorder %s93, %s95
      %p102 = scmp.eq.s32.totalorder %s27, 1
      %p103 = por %p101, %p102
      %p104 = scmp.ne.s32.totalorder %s95, %s96
      %p105 = scmp.eq.s32.totalorder %s27, 0
      %p106 = por %p104, %p105
      %p107 = scmp.ne.s32.totalorder %s95, %s96
      %p108 = scmp.eq.s32.totalorder %s28, 1
      %p109 = por %p107, %p108
      %p111 = scmp.ne.s32.totalorder %s96, %s110
      %p112 = scmp.eq.s32.totalorder %s28, 0
      %p113 = por %p111, %p112
      %s115 = sadd.s32 %s114, 1
      %p118 = scmp.eq.s32.totalorder %s22, 1
      %p119 = scmp.ne.s32.totalorder %s114, %s116
      %p120 = scmp.eq.s32.totalorder %s22, 0
      %p121 = por %p119, %p120
      %p122 = scmp.ne.s32.totalorder %s114, %s116
      %p123 = scmp.eq.s32.totalorder %s27, 1
      %p124 = por %p122, %p123
      %p125 = scmp.ne.s32.totalorder %s116, %s117
      %p126 = scmp.eq.s32.totalorder %s27, 0
      %p127 = por %p125, %p126
      %p128 = scmp.ne.s32.totalorder %s116, %s117
      %p129 = scmp.eq.s32.totalorder %s28, 1
      %p130 = por %p128, %p129
      %p132 = scmp.ne.s32.totalorder %s117, %s131
      %p133 = scmp.eq.s32.totalorder %s28, 0
      %p134 = por %p132, %p133
      %s135 = ssub.s32 %s22, %s29
      %p136 = scmp.eq.s32.totalorder %s135, 0
      %s138 = sadd.s32 %s137, 1
      %s139 = scalar_select %p136, %s137, %s138
      %p142 = pneg %p136
      %p143 = scmp.eq.s32.totalorder %s22, 1
      %p144 = por %p142, %p143
      %p145 = scmp.ne.s32.totalorder %s137, %s140
      %p146 = scmp.eq.s32.totalorder %s22, 0
      %p147 = por %p145, %p146
      %p148 = scmp.ne.s32.totalorder %s137, %s140
      %p149 = scmp.eq.s32.totalorder %s27, 1
      %p150 = por %p148, %p149
      %p151 = scmp.ne.s32.totalorder %s140, %s141
      %p152 = scmp.eq.s32.totalorder %s27, 0
      %p153 = por %p151, %p152
      %p154 = scmp.ne.s32.totalorder %s140, %s141
      %p155 = scmp.eq.s32.totalorder %s28, 1
      %p156 = por %p154, %p155
      %p158 = scmp.ne.s32.totalorder %s141, %s157
      %p159 = scmp.eq.s32.totalorder %s28, 0
      %p160 = por %p158, %p159
      %s161 = ssub.s32 %s22, %s29
      %p162 = scmp.eq.s32.totalorder %s161, 0
      %s164 = sadd.s32 %s163, 1
      %s165 = scalar_select %p162, %s163, %s164
      %p168 = pneg %p162
      %p169 = scmp.eq.s32.totalorder %s22, 1
      %p170 = por %p168, %p169
      %p171 = scmp.ne.s32.totalorder %s163, %s166
      %p172 = scmp.eq.s32.totalorder %s22, 0
      %p173 = por %p171, %p172
      %p174 = scmp.ne.s32.totalorder %s163, %s166
      %p175 = scmp.eq.s32.totalorder %s27, 1
      %p176 = por %p174, %p175
      %p177 = scmp.ne.s32.totalorder %s166, %s167
      %p178 = scmp.eq.s32.totalorder %s27, 0
      %p179 = por %p177, %p178
      %p180 = scmp.ne.s32.totalorder %s166, %s167
      %p181 = scmp.eq.s32.totalorder %s28, 1
      %p182 = por %p180, %p181
      %p184 = scmp.ne.s32.totalorder %s167, %s183
      %p185 = scmp.eq.s32.totalorder %s28, 0
      %p186 = por %p184, %p185
      %s187 = ssub.s32 %s22, %s29
      %p188 = scmp.eq.s32.totalorder %s187, 0
      %s190 = sadd.s32 %s189, 1
      %s191 = scalar_select %p188, %s189, %s190
      %p194 = pneg %p188
      %p195 = scmp.eq.s32.totalorder %s22, 1
      %p196 = por %p194, %p195
      %p197 = scmp.ne.s32.totalorder %s189, %s192
      %p198 = scmp.eq.s32.totalorder %s22, 0
      %p199 = por %p197, %p198
      %p200 = scmp.ne.s32.totalorder %s189, %s192
      %p201 = scmp.eq.s32.totalorder %s27, 1
      %p202 = por %p200, %p201
      %p203 = scmp.ne.s32.totalorder %s192, %s193
      %p204 = scmp.eq.s32.totalorder %s27, 0
      %p205 = por %p203, %p204
      %p206 = scmp.ne.s32.totalorder %s192, %s193
      %p207 = scmp.eq.s32.totalorder %s28, 1
      %p208 = por %p206, %p207
      %p210 = scmp.ne.s32.totalorder %s193, %s209
      %p211 = scmp.eq.s32.totalorder %s28, 0
      %p212 = por %p210, %p211
      %s214 = sadd.s32 %s213, 1
      %p217 = scmp.eq.s32.totalorder %s22, 1
      %p218 = scmp.ne.s32.totalorder %s213, %s215
      %p219 = scmp.eq.s32.totalorder %s22, 0
      %p220 = por %p218, %p219
      %p221 = scmp.ne.s32.totalorder %s213, %s215
      %p222 = scmp.eq.s32.totalorder %s27, 1
      %p223 = por %p221, %p222
      %p224 = scmp.ne.s32.totalorder %s215, %s216
      %p225 = scmp.eq.s32.totalorder %s27, 0
      %p226 = por %p224, %p225
      %p227 = scmp.ne.s32.totalorder %s215, %s216
      %p228 = scmp.eq.s32.totalorder %s28, 1
      %p229 = por %p227, %p228
      %p231 = scmp.ne.s32.totalorder %s216, %s230
      %p232 = scmp.eq.s32.totalorder %s28, 0
      %p233 = por %p231, %p232
      %p234 = scmp.le.s32.totalorder 1, %s22
      %p235 = scmp.lt.s32.totalorder %s22, 3
      %p236 = pnand %p234, %p235
      %p237 = pneg %p236
      // Predicated region
      $region9: #{tpu_custom_call.1} parent=5 // pred_check
        _
      $region10: #{tpu_custom_call.1} parent=5 // pred_check_branch
        %239 = sbr.rel (%p236) target = $region12
      $region11: #{tpu_custom_call.1} parent=5 // pred_region
        %s240 = ssub.s32 %s22, 1
        // Predicated region
        $region13: #{tpu_custom_call.1} parent=11 // pred_check
          %p241 = pneg %p43
        $region14: #{tpu_custom_call.1} parent=11 // pred_check_branch
          %243 = sbr.rel (%p241) target = $region16
        $region15: #{tpu_custom_call.1} parent=11 // pred_region
          %245 = vsyncadd [#allocation4], 0
          %s247 = sshll.u32 %s0, 4
          %s248 = int_to_ptr.hbm [resolvable:$true] %s247
          %s249 = sshll.u32 [#allocation3], 4
          %s250 = int_to_ptr.vmem [resolvable:$true] %s249
          %252 = dma.hbm_to_vmem [thread:$0]  %s248, 128, %s250, [#allocation4]
        $region16: #{tpu_custom_call.1} parent=11 // pred_fallthru
          _
        // Predicated region
        $region17: #{tpu_custom_call.1} parent=11 // pred_check
          %p253 = pneg %p64
        $region18: #{tpu_custom_call.1} parent=11 // pred_check_branch
          %255 = sbr.rel (%p253) target = $region20
        $region19: #{tpu_custom_call.1} parent=11 // pred_region
          %257 = vsyncadd [#allocation7], 0
          %s258 = sshll.u32 %s1, 4
          %s259 = int_to_ptr.hbm [resolvable:$true] %s258
          %s260 = sshll.u32 [#allocation6], 4
          %s261 = int_to_ptr.vmem [resolvable:$true] %s260
          %266 = dma.hbm_to_vmem [thread:$0]  %s259, 256, %s261, [#allocation7], 128, 128, 8
        $region20: #{tpu_custom_call.1} parent=11 // pred_fallthru
          _
        // Predicated region
        $region21: #{tpu_custom_call.1} parent=11 // pred_check
          %p267 = pneg %p85
        $region22: #{tpu_custom_call.1} parent=11 // pred_check_branch
          %269 = sbr.rel (%p267) target = $region24
        $region23: #{tpu_custom_call.1} parent=11 // pred_region
          _
        $region24: #{tpu_custom_call.1} parent=11 // pred_fallthru
          _
        // Predicated region
        $region25: #{tpu_custom_call.1} parent=11 // pred_check
          %p270 = pneg %p106
        $region26: #{tpu_custom_call.1} parent=11 // pred_check_branch
          %272 = sbr.rel (%p270) target = $region28
        $region27: #{tpu_custom_call.1} parent=11 // pred_region
          %274 = vsyncadd [#allocation7], 0
          %s275 = sshll.u32 %s3, 4
          %s276 = int_to_ptr.hbm [resolvable:$true] %s275
          %s277 = sshll.u32 [#allocation8], 4
          %s278 = int_to_ptr.vmem [resolvable:$true] %s277
          %283 = dma.hbm_to_vmem [thread:$0]  %s276, 2048, %s278, [#allocation7], 128, 128, 8
        $region28: #{tpu_custom_call.1} parent=11 // pred_fallthru
          _
        // Predicated region
        $region29: #{tpu_custom_call.1} parent=11 // pred_check
          %p284 = pneg %p127
        $region30: #{tpu_custom_call.1} parent=11 // pred_check_branch
          %286 = sbr.rel (%p284) target = $region32
        $region31: #{tpu_custom_call.1} parent=11 // pred_region
          %288 = vsyncadd [#allocation10], 0
          %s290 = sshll.u32 %s4, 4
          %s291 = int_to_ptr.hbm [resolvable:$true] %s290
          %s292 = sshll.u32 [#allocation9], 4
          %s293 = int_to_ptr.vmem [resolvable:$true] %s292
          %295 = dma.hbm_to_vmem [thread:$0]  %s291, 16, %s293, [#allocation10]
        $region32: #{tpu_custom_call.1} parent=11 // pred_fallthru
          _
      $region12: #{tpu_custom_call.1} parent=5 // pred_fallthru
        _
      %p296 = scmp.lt.s32.totalorder %s22, 2
      // Predicated region
      $region33: #{tpu_custom_call.1} parent=5 // pred_check
        %p297 = pneg %p296
      $region34: #{tpu_custom_call.1} parent=5 // pred_check_branch
        %299 = sbr.rel (%p297) target = $region36
      $region35: #{tpu_custom_call.1} parent=5 // pred_region
        // Predicated region
        $region37: #{tpu_custom_call.1} parent=35 // pred_check
          %p300 = pneg %p147
        $region38: #{tpu_custom_call.1} parent=35 // pred_check_branch
          %302 = sbr.rel (%p300) target = $region40
        $region39: #{tpu_custom_call.1} parent=35 // pred_region
          %s303 = sand.u32 %s22, 1
          %s304 = scalar_lea.sflag [#allocation4], %s303
          %s305 = sand.u32 %s137, 1
          %s306 = smul.addr %s305, 256
          %s307 = scalar_lea.vmem [#allocation11], %s306
          %309 = vsyncadd %s304, 0
          %s310 = smul.addr %s22, 32
          %s311 = smul.addr %s310, 8
          %s312 = scalar_lea.hbm %s5, %s311
          %s313 = sshll.u32 %s312, 4
          %s314 = int_to_ptr.hbm [resolvable:$true] %s313
          %s315 = sshll.u32 %s307, 4
          %s316 = int_to_ptr.vmem [resolvable:$true] %s315
          %321 = dma.hbm_to_vmem [thread:$0]  %s314, 4096, %s316, %s304, 256, 256, 16
        $region40: #{tpu_custom_call.1} parent=35 // pred_fallthru
          _
        // Predicated region
        $region41: #{tpu_custom_call.1} parent=35 // pred_check
          %p322 = pneg %p173
        $region42: #{tpu_custom_call.1} parent=35 // pred_check_branch
          %324 = sbr.rel (%p322) target = $region44
        $region43: #{tpu_custom_call.1} parent=35 // pred_region
          %p325 = scmp.lt.s32.totalorder %s22, 1
          %s326 = scalar_select %p325, %s22, 1
          %s327 = smul.addr %s326, 2
          %s328 = scalar_lea.vmem %s6, %s327
        $region44: #{tpu_custom_call.1} parent=35 // pred_fallthru
          _
      $region36: #{tpu_custom_call.1} parent=5 // pred_fallthru
        _
      %p329 = scmp.le.s32.totalorder 1, %s22
      %p330 = scmp.lt.s32.totalorder %s22, 3
      %p331 = pnand %p329, %p330
      %p332 = pneg %p331
      // Predicated region
      $region45: #{tpu_custom_call.1} parent=5 // pred_check
        _
      $region46: #{tpu_custom_call.1} parent=5 // pred_check_branch
        %334 = sbr.rel (%p331) target = $region48
      $region47: #{tpu_custom_call.1} parent=5 // pred_region
        %s335 = ssub.s32 %s22, 1
        // Predicated region
        $region49: #{tpu_custom_call.1} parent=47 // pred_check
          %p336 = pneg %p43
        $region50: #{tpu_custom_call.1} parent=47 // pred_check_branch
          %338 = sbr.rel (%p336) target = $region52
        $region51: #{tpu_custom_call.1} parent=47 // pred_region
          %340 = dma.done [#allocation4], 128
        $region52: #{tpu_custom_call.1} parent=47 // pred_fallthru
          _
        // Predicated region
        $region53: #{tpu_custom_call.1} parent=47 // pred_check
          %p341 = pneg %p64
        $region54: #{tpu_custom_call.1} parent=47 // pred_check_branch
          %343 = sbr.rel (%p341) target = $region56
        $region55: #{tpu_custom_call.1} parent=47 // pred_region
          %345 = dma.done [#allocation7], 256
        $region56: #{tpu_custom_call.1} parent=47 // pred_fallthru
          _
        // Predicated region
        $region57: #{tpu_custom_call.1} parent=47 // pred_check
          %p346 = pneg %p106
        $region58: #{tpu_custom_call.1} parent=47 // pred_check_branch
          %348 = sbr.rel (%p346) target = $region60
        $region59: #{tpu_custom_call.1} parent=47 // pred_region
          %350 = dma.done [#allocation7], 2048
        $region60: #{tpu_custom_call.1} parent=47 // pred_fallthru
          _
        // Predicated region
        $region61: #{tpu_custom_call.1} parent=47 // pred_check
          %p351 = pneg %p127
        $region62: #{tpu_custom_call.1} parent=47 // pred_check_branch
          %353 = sbr.rel (%p351) target = $region64
        $region63: #{tpu_custom_call.1} parent=47 // pred_region
          %355 = dma.done [#allocation10], 16
        $region64: #{tpu_custom_call.1} parent=47 // pred_fallthru
          _
        %s356 = sand.u32 %s27, 1
        %s357 = scalar_lea.sflag [#allocation4], %s356
        %s358 = sand.u32 %s140, 1
        %s359 = smul.addr %s358, 256
        %s360 = scalar_lea.vmem [#allocation11], %s359
        // Predicated region
        $region65: #{tpu_custom_call.1} parent=47 // pred_check
          %p361 = pneg %p153
        $region66: #{tpu_custom_call.1} parent=47 // pred_check_branch
          %363 = sbr.rel (%p361) target = $region68
        $region67: #{tpu_custom_call.1} parent=47 // pred_region
          %365 = dma.done %s357, 4096
        $region68: #{tpu_custom_call.1} parent=47 // pred_fallthru
          _
        %p366 = pneg %p43
        %p367 = pneg %p40
        %p368 = pneg %p64
        %p369 = pneg %p61
        %p370 = pneg %p85
        %p371 = pneg %p82
        %p372 = pneg %p106
        %p373 = pneg %p103
        %p374 = pneg %p127
        %p375 = pneg %p124
        %s376 = sand.u32 %s27, 1
        %s377 = scalar_lea.sflag [#allocation4], %s376
        %s378 = sand.u32 %s140, 1
        %s379 = smul.addr %s378, 256
        %s380 = scalar_lea.vmem [#allocation11], %s379
        %p381 = pneg %p153
        %p382 = pneg %p150
        %p383 = scmp.lt.s32.totalorder %s27, 1
        %s384 = scalar_select %p383, %s27, 1
        %s385 = smul.addr %s384, 2
        %s386 = scalar_lea.vmem %s6, %s385
        %p387 = pneg %p179
        %p388 = pneg %p176
        %p389 = pneg %p205
        %p390 = pneg %p202
        %s391 = sand.u32 %s192, 1
        %s392 = scalar_lea.sflag [#allocation5], %s391
        %s393 = sand.u32 %s192, 1
        %s394 = smul.addr %s393, 8
        %s395 = scalar_lea.vmem [#allocation12], %s394
        %p396 = pneg %p226
        %p397 = pneg %p223
        %p398 = scmp.lt.s32.totalorder %s27, 1
        %s399 = scalar_select %p398, %s27, 1
        %s400 = smul.addr %s399, 2
        %s401 = scalar_lea.vmem %s6, %s400
        %p402 = scmp.eq.s32.totalorder %s27, 0
        // Predicated region
        $region69: #{tpu_custom_call.1} parent=47 // pred_check
          %p403 = pneg %p402
        $region70: #{tpu_custom_call.1} parent=47 // pred_check_branch
          %405 = sbr.rel (%p403) target = $region72
        $region71: #{tpu_custom_call.1} parent=47 // pred_region
          %v406 = vld [vmem:[#allocation3] sm:$0xff]
          %v407 = vld [vmem:[#allocation6] sm:$0xff]
          %v408 = vld [vmem:[#allocation6 + $0x8] sm:$0xff]
          %v409 = vld [vmem:[%s2] sm:$0x1]
          %v411 = vperm.slane %v409, 0
          %vm413 = vcmask 130048
          %v415 = vsel %vm413, %v406, 0
          %417 = vmatpush.msra.mxu0 0.0
          %418 = vmatpush.msra.mxu0 0.0
          %419 = vmatpush.msra.mxu0 0.0
          %420 = vmatpush.msra.mxu0 0.0
          %421 = vmatpush.msra.mxu0 0.0
          %422 = vmatpush.msra.mxu0 0.0
          %423 = vmatpush.msra.mxu0 0.0
          %424 = vmatpush.msra.mxu0 0.0
          %425 = vmatpush.msra.mxu0 0.0
          %426 = vmatpush.msra.mxu0 0.0
          %427 = vmatpush.msra.mxu0 0.0
          %428 = vmatpush.msra.mxu0 0.0
          %429 = vmatpush.msra.mxu0 0.0
          %430 = vmatpush.msra.mxu0 0.0
          %431 = vmatpush.msra.mxu0 %v408
          %432 = vmatpush.msra.mxu0 %v407
          %433 = vmatmul.f32.gmra.mxu0 %v415
          %v434 = vpop.f32.mrf.mxu0
          %v435 = vadd.f32 %v411, %v434
          %436 = vdwg.mxu0
          %v437 = vmax.f32 %v435, 0.0
          %v438 = vld [vmem:[#allocation8] sm:$0xff]
          %v439 = vld [vmem:[#allocation8 + $0x8] sm:$0xff]
          %v440 = vld [vmem:[#allocation8 + $0x10] sm:$0xff]
          %v441 = vld [vmem:[#allocation8 + $0x18] sm:$0xff]
          %v442 = vld [vmem:[#allocation8 + $0x20] sm:$0xff]
          %v443 = vld [vmem:[#allocation8 + $0x28] sm:$0xff]
          %v444 = vld [vmem:[#allocation8 + $0x30] sm:$0xff]
          %v445 = vld [vmem:[#allocation8 + $0x38] sm:$0xff]
          %v446 = vld [vmem:[#allocation8 + $0x40] sm:$0xff]
          %v447 = vld [vmem:[#allocation8 + $0x48] sm:$0xff]
          %v448 = vld [vmem:[#allocation8 + $0x50] sm:$0xff]
          %v449 = vld [vmem:[#allocation8 + $0x58] sm:$0xff]
          %v450 = vld [vmem:[#allocation8 + $0x60] sm:$0xff]
          %v451 = vld [vmem:[#allocation8 + $0x68] sm:$0xff]
          %v452 = vld [vmem:[#allocation8 + $0x70] sm:$0xff]
          %v453 = vld [vmem:[#allocation8 + $0x78] sm:$0xff]
          %v454 = vld [vmem:[#allocation9] sm:$0x1]
          %v456 = vperm.slane %v454, 0
          %458 = vmatpush.msra.mxu0 %v453
          %459 = vmatpush.msra.mxu0 %v452
          %460 = vmatpush.msra.mxu0 %v451
          %461 = vmatpush.msra.mxu0 %v450
          %462 = vmatpush.msra.mxu0 %v449
          %463 = vmatpush.msra.mxu0 %v448
          %464 = vmatpush.msra.mxu0 %v447
          %465 = vmatpush.msra.mxu0 %v446
          %466 = vmatpush.msra.mxu0 %v445
          %467 = vmatpush.msra.mxu0 %v444
          %468 = vmatpush.msra.mxu0 %v443
          %469 = vmatpush.msra.mxu0 %v442
          %470 = vmatpush.msra.mxu0 %v441
          %471 = vmatpush.msra.mxu0 %v440
          %472 = vmatpush.msra.mxu0 %v439
          %473 = vmatpush.msra.mxu0 %v438
          %474 = vmatmul.f32.gmra.mxu0 %v437
          %v475 = vpop.f32.mrf.mxu0
          %v476 = vadd.f32 %v456, %v475
          %477 = vdwg.mxu0
          %v478 = vmax.f32 %v476, 0.0
          %479 = vst [vmem:[#allocation2] sm:$0xff] %v478
        $region72: #{tpu_custom_call.1} parent=47 // pred_fallthru
          _
        %v480 = vld [vmem:[#allocation2] sm:$0xff]
        %v481 = vld [vmem:[%s360] sm:$0xff]
        %v482 = vld [vmem:[%s360 + $0x8] sm:$0xff]
        %v483 = vld [vmem:[%s360 + $0x10] sm:$0xff]
        %v484 = vld [vmem:[%s360 + $0x18] sm:$0xff]
        %v485 = vld [vmem:[%s360 + $0x20] sm:$0xff]
        %v486 = vld [vmem:[%s360 + $0x28] sm:$0xff]
        %v487 = vld [vmem:[%s360 + $0x30] sm:$0xff]
        %v488 = vld [vmem:[%s360 + $0x38] sm:$0xff]
        %v489 = vld [vmem:[%s360 + $0x40] sm:$0xff]
        %v490 = vld [vmem:[%s360 + $0x48] sm:$0xff]
        %v491 = vld [vmem:[%s360 + $0x50] sm:$0xff]
        %v492 = vld [vmem:[%s360 + $0x58] sm:$0xff]
        %v493 = vld [vmem:[%s360 + $0x60] sm:$0xff]
        %v494 = vld [vmem:[%s360 + $0x68] sm:$0xff]
        %v495 = vld [vmem:[%s360 + $0x70] sm:$0xff]
        %v496 = vld [vmem:[%s360 + $0x78] sm:$0xff]
        %v497 = vld [vmem:[%s360 + $0x80] sm:$0xff]
        %v498 = vld [vmem:[%s360 + $0x88] sm:$0xff]
        %v499 = vld [vmem:[%s360 + $0x90] sm:$0xff]
        %v500 = vld [vmem:[%s360 + $0x98] sm:$0xff]
        %v501 = vld [vmem:[%s360 + $0xa0] sm:$0xff]
        %v502 = vld [vmem:[%s360 + $0xa8] sm:$0xff]
        %v503 = vld [vmem:[%s360 + $0xb0] sm:$0xff]
        %v504 = vld [vmem:[%s360 + $0xb8] sm:$0xff]
        %v505 = vld [vmem:[%s360 + $0xc0] sm:$0xff]
        %v506 = vld [vmem:[%s360 + $0xc8] sm:$0xff]
        %v507 = vld [vmem:[%s360 + $0xd0] sm:$0xff]
        %v508 = vld [vmem:[%s360 + $0xd8] sm:$0xff]
        %v509 = vld [vmem:[%s360 + $0xe0] sm:$0xff]
        %v510 = vld [vmem:[%s360 + $0xe8] sm:$0xff]
        %v511 = vld [vmem:[%s360 + $0xf0] sm:$0xff]
        %v512 = vld [vmem:[%s360 + $0xf8] sm:$0xff]
        %v513 = vld [vmem:[%s401] sm:$0x3]
        %v515 = vperm.slane %v513, 0
        %v516 = vperm.slane %v513, 1
        %519 = vmatpush.msra.mxu0 %v511
        %520 = vmatpush.msra.mxu0 %v509
        %521 = vmatpush.msra.mxu0 %v507
        %522 = vmatpush.msra.mxu0 %v505
        %523 = vmatpush.msra.mxu0 %v503
        %524 = vmatpush.msra.mxu0 %v501
        %525 = vmatpush.msra.mxu0 %v499
        %526 = vmatpush.msra.mxu0 %v497
        %527 = vmatpush.msra.mxu0 %v495
        %528 = vmatpush.msra.mxu0 %v493
        %529 = vmatpush.msra.mxu0 %v491
        %530 = vmatpush.msra.mxu0 %v489
        %531 = vmatpush.msra.mxu0 %v487
        %532 = vmatpush.msra.mxu0 %v485
        %533 = vmatpush.msra.mxu0 %v483
        %534 = vmatpush.msra.mxu0 %v481
        %535 = vmatmul.f32.gmra.mxu0 %v480
        %v536 = vpop.f32.mrf.mxu0
        %v537 = vadd.f32 %v515, %v536
        %538 = vdwg.mxu0
        %539 = vmatpush.msra.mxu0 %v512
        %540 = vmatpush.msra.mxu0 %v510
        %541 = vmatpush.msra.mxu0 %v508
        %542 = vmatpush.msra.mxu0 %v506
        %543 = vmatpush.msra.mxu0 %v504
        %544 = vmatpush.msra.mxu0 %v502
        %545 = vmatpush.msra.mxu0 %v500
        %546 = vmatpush.msra.mxu0 %v498
        %547 = vmatpush.msra.mxu0 %v496
        %548 = vmatpush.msra.mxu0 %v494
        %549 = vmatpush.msra.mxu0 %v492
        %550 = vmatpush.msra.mxu0 %v490
        %551 = vmatpush.msra.mxu0 %v488
        %552 = vmatpush.msra.mxu0 %v486
        %553 = vmatpush.msra.mxu0 %v484
        %554 = vmatpush.msra.mxu0 %v482
        %555 = vmatmul.f32.gmra.mxu0 %v480
        %v556 = vpop.f32.mrf.mxu0
        %v557 = vadd.f32 %v516, %v556
        %558 = vdwg.mxu0
        %v559 = vxor.u32 %v557, 2147483648
        %v560 = vmul.f32 %v559, 1.442695
        %v561 = vpow.pop %v560
        %v562 = vadd.f32 %v561, 1.0
        %v563 = vrcp.pop %v562
        %v564 = vmul.f32 %v562, %v563
        %v565 = vsub.f32 1.0, %v564
        %v566 = vmul.f32 %v563, %v565
        %v567 = vadd.f32 %v563, %v566
        %vm568 = vweird.f32 %v562
        %vm569 = vweird.f32 %v563
        %vm570 = vmor %vm568, %vm569
        %v571 = vsel %vm570, %v563, %v567
        %v572 = vand.u32 2147483647, %v562
        %vm573 = vcmp.eq.f32.partialorder %v572, 8.507059e+37
        %v574 = vand.u32 %v562, 2147483648
        %v575 = vor.u32 1.1754944e-38, %v574
        %v576 = vsel %vm573, %v575, %v571
        %v577 = vmul.f32 1.0, %v576
        %578 = vst [vmem:[%s395] sm:$0xff] %v577
        %p579 = scmp.lt.s32.totalorder %s27, 1
        // Predicated region
        $region73: #{tpu_custom_call.1} parent=47 // pred_check
          %p580 = pneg %p579
        $region74: #{tpu_custom_call.1} parent=47 // pred_check_branch
          %582 = sbr.rel (%p580) target = $region76
        $region75: #{tpu_custom_call.1} parent=47 // pred_region
          %v583 = vmax.f32 %v537, 0.0
          %584 = vst [vmem:[#allocation2] sm:$0xff] %v583
        $region76: #{tpu_custom_call.1} parent=47 // pred_fallthru
          _
        %p585 = scmp.eq.s32.totalorder %s27, 1
        // Predicated region
        $region77: #{tpu_custom_call.1} parent=47 // pred_check
          %p586 = pneg %p585
        $region78: #{tpu_custom_call.1} parent=47 // pred_check_branch
          %588 = sbr.rel (%p586) target = $region80
        $region79: #{tpu_custom_call.1} parent=47 // pred_region
          %v589 = vxor.u32 %v537, 2147483648
          %v590 = vmul.f32 %v589, 1.442695
          %v591 = vpow.pop %v590
          %v592 = vadd.f32 %v591, 1.0
          %v593 = vrcp.pop %v592
          %v594 = vmul.f32 %v592, %v593
          %v595 = vsub.f32 1.0, %v594
          %v596 = vmul.f32 %v593, %v595
          %v597 = vadd.f32 %v593, %v596
          %vm598 = vweird.f32 %v592
          %vm599 = vweird.f32 %v593
          %vm600 = vmor %vm598, %vm599
          %v601 = vsel %vm600, %v593, %v597
          %v602 = vand.u32 2147483647, %v592
          %vm603 = vcmp.eq.f32.partialorder %v602, 8.507059e+37
          %v604 = vand.u32 %v592, 2147483648
          %v605 = vor.u32 1.1754944e-38, %v604
          %v606 = vsel %vm603, %v605, %v601
          %v607 = vmul.f32 1.0, %v606
          %608 = vst [vmem:[#allocation13] sm:$0xff] %v607
        $region80: #{tpu_custom_call.1} parent=47 // pred_fallthru
          _
        %s609 = sand.u32 %s192, 1
        %s610 = scalar_lea.sflag [#allocation5], %s609
        %s611 = sand.u32 %s192, 1
        %s612 = smul.addr %s611, 8
        %s613 = scalar_lea.vmem [#allocation12], %s612
        // Predicated region
        $region81: #{tpu_custom_call.1} parent=47 // pred_check
          %p614 = pneg %p202
        $region82: #{tpu_custom_call.1} parent=47 // pred_check_branch
          %616 = sbr.rel (%p614) target = $region84
        $region83: #{tpu_custom_call.1} parent=47 // pred_region
          %618 = vsyncadd %s610, 0
          %s619 = smul.addr %s27, 8
          %s620 = scalar_lea.hbm %s7, %s619
          %s622 = sshll.u32 %s613, 4
          %s623 = int_to_ptr.vmem [resolvable:$true] %s622
          %s624 = sshll.u32 %s620, 4
          %s625 = int_to_ptr.hbm [resolvable:$true] %s624
          %627 = dma.vmem_to_hbm [thread:$0]  %s623, 128, %s625, %s610
        $region84: #{tpu_custom_call.1} parent=47 // pred_fallthru
          _
        // Predicated region
        $region85: #{tpu_custom_call.1} parent=47 // pred_check
          %p628 = pneg %p223
        $region86: #{tpu_custom_call.1} parent=47 // pred_check_branch
          %630 = sbr.rel (%p628) target = $region88
        $region87: #{tpu_custom_call.1} parent=47 // pred_region
          %632 = vsyncadd [#allocation14], 0
          %s634 = sshll.u32 [#allocation13], 4
          %s635 = int_to_ptr.vmem [resolvable:$true] %s634
          %s636 = sshll.u32 %s8, 4
          %s637 = int_to_ptr.hbm [resolvable:$true] %s636
          %639 = dma.vmem_to_hbm [thread:$0]  %s635, 128, %s637, [#allocation14]
        $region88: #{tpu_custom_call.1} parent=47 // pred_fallthru
          _
        // Predicated region
        $region89: #{tpu_custom_call.1} parent=47 // pred_check
          %p640 = pneg %p223
        $region90: #{tpu_custom_call.1} parent=47 // pred_check_branch
          %642 = sbr.rel (%p640) target = $region92
        $region91: #{tpu_custom_call.1} parent=47 // pred_region
          %644 = dma.done [#allocation14], 128
        $region92: #{tpu_custom_call.1} parent=47 // pred_fallthru
          _
      $region48: #{tpu_custom_call.1} parent=5 // pred_fallthru
        _
      %p645 = scmp.le.s32.totalorder 2, %s22
      // Predicated region
      $region93: #{tpu_custom_call.1} parent=5 // pred_check
        %p646 = pneg %p645
      $region94: #{tpu_custom_call.1} parent=5 // pred_check_branch
        %648 = sbr.rel (%p646) target = $region96
      $region95: #{tpu_custom_call.1} parent=5 // pred_region
        %s649 = ssub.s32 %s22, 2
        // Predicated region
        $region97: #{tpu_custom_call.1} parent=95 // pred_check
          %p650 = pneg %p208
        $region98: #{tpu_custom_call.1} parent=95 // pred_check_branch
          %652 = sbr.rel (%p650) target = $region100
        $region99: #{tpu_custom_call.1} parent=95 // pred_region
          %s653 = sand.u32 %s193, 1
          %s654 = scalar_lea.sflag [#allocation5], %s653
          %s655 = sand.u32 %s193, 1
          %s656 = smul.addr %s655, 8
          %s657 = scalar_lea.vmem [#allocation12], %s656
          %659 = dma.done %s654, 128
        $region100: #{tpu_custom_call.1} parent=95 // pred_fallthru
          _
      $region96: #{tpu_custom_call.1} parent=5 // pred_fallthru
        _
    $region6: #{tpu_custom_call.1} parent=1 // loop_footer
      %s26 = sadd.s32 1, %s22
    $region7: #{tpu_custom_call.1} parent=1 // loop_footer_branch
      %21 = sbr.rel target = $region3
    $region8: #{tpu_custom_call.1} parent=1 // loop_exit
      _
    %660 = vsyncpa [#allocation4], 1
    %s661 = scalar_lea.sflag [#allocation4], 1
    %662 = vsyncpa %s661, 1
    %663 = vsyncpa [#allocation7], 1
    %664 = vsyncpa [#allocation10], 1
    %665 = vsyncpa [#allocation5], 1
    %s666 = scalar_lea.sflag [#allocation5], 1
    %667 = vsyncpa %s666, 1
    %668 = vsyncpa [#allocation14], 1

</llo_original>
